<compile_context>
chip_gen: v5e
topology: v5e:2x2
jax: 0.10.0
libtpu: 0.0.40
codegen_flags: <defaults>
</compile_context>

<pallas_src>
import jax
import jax.numpy as jnp
from jax import lax
from jax.experimental import pallas as pl
from jax.experimental.pallas import tpu as pltpu


# ------------------------------- kernel -------------------------------------

def _attention_gate_kernel(x_ref, g_ref, wt_ref, wp_ref, bf_ref,
                           wpsi_ref, bpsi_ref, o_ref):
    """One (batch, spatial tile) per grid step.

    x_ref : (1, Cin,    T)   g_ref : (1, Cg, T)
    wt    : (Cinter, Cin)    wp    : (Cinter, Cg)   bf : (Cinter, 1)
    wpsi  : (1, Cinter)      bpsi  : (1, 1)
    o_ref : (1, Cin,    T)
    """
    x = x_ref[0]                                   # (Cin, T)
    g = g_ref[0]                                   # (Cg,  T)

    # f = relu(theta(x) + phi(g))  -> (Cinter, T), lane-dense
    f = jnp.dot(wt_ref[...], x, preferred_element_type=jnp.float32)
    f = f + jnp.dot(wp_ref[...], g, preferred_element_type=jnp.float32)
    f = jnp.maximum(f + bf_ref[...], 0.0)

    # psi = sigmoid(psi_conv(f)) -> (1, T)
    s = jnp.dot(wpsi_ref[...], f, preferred_element_type=jnp.float32)
    psi = jax.nn.sigmoid(s + bpsi_ref[...])        # (1, T)

    # gate x (broadcast over channels); store is lane-dense (T multiple of 128)
    o_ref[0] = (x * psi).astype(o_ref.dtype)


# ------------------------------- wrapper ------------------------------------

def _pick_tile(hw, cap=2048):
    """Largest multiple of 128 that divides hw and is <= cap; else full hw."""
    best = None
    t = 128
    while t <= min(hw, cap):
        if hw % t == 0:
            best = t
        t += 128
    return best if best is not None else hw


def attention_gate_forward(x_nchw, g_nchw, kp):
    """x: (N, Cin, H, W), g: (N, Cg, H, W) float32; kp: kernel params dict."""
    N, Cin, H, W = x_nchw.shape
    Ng, Cg, Hg, Wg = g_nchw.shape
    assert (N, H, W) == (Ng, Hg, Wg), "x and g must share batch/spatial dims"
    Cinter = kp["wt"].shape[0]

    HW = H * W
    T = _pick_tile(HW)
    n_tiles = HW // T

    # NCHW flattened: spatial on lanes, channels on sublanes (no transpose).
    x = x_nchw.reshape(N, Cin, HW)
    g = g_nchw.reshape(N, Cg, HW)

    def whole(shape):
        nd = len(shape)
        return pl.BlockSpec(shape, lambda b, t, _nd=nd: (0,) * _nd)

    out = pl.pallas_call(
        _attention_gate_kernel,
        out_shape=jax.ShapeDtypeStruct((N, Cin, HW), jnp.float32),
        grid_spec=pltpu.PrefetchScalarGridSpec(
            num_scalar_prefetch=0,
            grid=(N, n_tiles),
            in_specs=[
                pl.BlockSpec((1, Cin, T), lambda b, t: (b, 0, t)),   # x
                pl.BlockSpec((1, Cg, T), lambda b, t: (b, 0, t)),    # g
                whole((Cinter, Cin)),                                # wt
                whole((Cinter, Cg)),                                 # wp
                whole((Cinter, 1)),                                  # bf
                whole((1, Cinter)),                                  # wpsi
                whole((1, 1)),                                       # bpsi
            ],
            out_specs=pl.BlockSpec((1, Cin, T), lambda b, t: (b, 0, t)),
        ),
        compiler_params=pltpu.CompilerParams(
            dimension_semantics=("parallel", "parallel")),
    )(x, g, kp["wt"], kp["wp"], kp["bf"], kp["wpsi"], kp["bpsi"])

    return out.reshape(N, Cin, H, W)


# ------------------------- parameter construction ---------------------------

def init_params(key, in_channels, gating_channels, inter_channels):
    """Deterministic synthetic weights in PyTorch OIHW layout."""
    keys = jax.random.split(key, 6)
    s = 0.2
    return {
        "theta_w": s * jax.random.normal(
            keys[0], (inter_channels, in_channels, 1, 1), jnp.float32),
        "theta_b": s * jax.random.normal(keys[1], (inter_channels,), jnp.float32),
        "phi_w": s * jax.random.normal(
            keys[2], (inter_channels, gating_channels, 1, 1), jnp.float32),
        "phi_b": s * jax.random.normal(keys[3], (inter_channels,), jnp.float32),
        "psi_w": s * jax.random.normal(
            keys[4], (1, inter_channels, 1, 1), jnp.float32),
        "psi_b": s * jax.random.normal(keys[5], (1,), jnp.float32),
    }


def to_kernel_params(p):
    """Convert OIHW 1x1-conv weights into matmul-friendly kernel params."""
    return {
        "wt": p["theta_w"][:, :, 0, 0],                    # (Cinter, Cin)
        "wp": p["phi_w"][:, :, 0, 0],                      # (Cinter, Cg)
        "bf": (p["theta_b"] + p["phi_b"])[:, None],        # fused bias (Cinter, 1)
        "wpsi": p["psi_w"][:, :, 0, 0],                    # (1, Cinter)
        "bpsi": p["psi_b"].reshape(1, 1),                  # (1, 1)
    }


# ----------------------------- pure-JAX reference ---------------------------

def attention_gate_reference(x, g, p):
    def conv1x1(z, w, b):
        y = jnp.einsum("nchw,oc->nohw", z, w[:, :, 0, 0],
                       precision=lax.Precision.HIGHEST)
        return y + b[None, :, None, None]

    theta_x = conv1x1(x, p["theta_w"], p["theta_b"])
    phi_g = conv1x1(g, p["phi_w"], p["phi_b"])
    f = jnp.maximum(theta_x + phi_g, 0.0)
    psi = jax.nn.sigmoid(conv1x1(f, p["psi_w"], p["psi_b"]))
    return x * psi


# --------------------------------- main --------------------------------------

if __name__ == "__main__":
    N, Cin, Cg, Cinter, H, W = 2, 4, 6, 8, 16, 16
    key = jax.random.PRNGKey(0)
    kx, kg, kw = jax.random.split(key, 3)

    x = jax.random.normal(kx, (N, Cin, H, W), jnp.float32)
    g = jax.random.normal(kg, (N, Cg, H, W), jnp.float32)

    params = init_params(kw, Cin, Cg, Cinter)
    kparams = to_kernel_params(params)

    out = attention_gate_forward(x, g, kparams)
    out = jax.block_until_ready(out)

    ref = jax.block_until_ready(attention_gate_reference(x, g, params))
    assert out.shape == ref.shape == (N, Cin, H, W)
    assert jnp.allclose(out, ref, atol=1e-4, rtol=1e-4), (
        float(jnp.max(jnp.abs(out - ref))))

    print("KERNEL_OK")
</pallas_src>

<mosaic_0001>
module attributes {stable_mosaic.version = 11 : i64} {
  func.func @_attention_gate_kernel(%arg0: i32, %arg1: i32, %arg2: memref<1x4x256xf32, #tpu.memory_space<vmem>>, %arg3: memref<1x6x256xf32, #tpu.memory_space<vmem>>, %arg4: memref<8x4xf32, #tpu.memory_space<vmem>>, %arg5: memref<8x6xf32, #tpu.memory_space<vmem>>, %arg6: memref<8x1xf32, #tpu.memory_space<vmem>>, %arg7: memref<1x8xf32, #tpu.memory_space<vmem>>, %arg8: memref<1x1xf32, #tpu.memory_space<vmem>>, %arg9: memref<1x4x256xf32, #tpu.memory_space<vmem>>) attributes {dimension_semantics = [#tpu.dimension_semantics<parallel>, #tpu.dimension_semantics<parallel>], iteration_bounds = array<i64: 2, 1>, scalar_prefetch = 0 : i64, scratch_operands = 0 : i64, tpu.core_type = #tpu.core_type<tc>, window_params = [{transform_indices = @transform_0, window_bounds = array<i64: 1, 4, 256>}, {transform_indices = @transform_1, window_bounds = array<i64: 1, 6, 256>}, {pipeline_mode = #tpu.pipeline_mode<synchronous>, transform_indices = @transform_2, window_bounds = array<i64: 8, 4>}, {pipeline_mode = #tpu.pipeline_mode<synchronous>, transform_indices = @transform_3, window_bounds = array<i64: 8, 6>}, {pipeline_mode = #tpu.pipeline_mode<synchronous>, transform_indices = @transform_4, window_bounds = array<i64: 8, 1>}, {pipeline_mode = #tpu.pipeline_mode<synchronous>, transform_indices = @transform_5, window_bounds = array<i64: 1, 8>}, {pipeline_mode = #tpu.pipeline_mode<synchronous>, transform_indices = @transform_6, window_bounds = array<i64: 1, 1>}, {transform_indices = @transform_7, window_bounds = array<i64: 1, 4, 256>}]} {
    %c0 = arith.constant 0 : index
    %c0_0 = arith.constant 0 : index
    %c0_1 = arith.constant 0 : index
    %0 = vector.load %arg2[%c0, %c0_0, %c0_1] : memref<1x4x256xf32, #tpu.memory_space<vmem>>, vector<1x4x256xf32>
    %1 = vector.shape_cast %0 : vector<1x4x256xf32> to vector<4x256xf32>
    %c0_2 = arith.constant 0 : index
    %c0_3 = arith.constant 0 : index
    %c0_4 = arith.constant 0 : index
    %2 = vector.load %arg3[%c0_2, %c0_3, %c0_4] : memref<1x6x256xf32, #tpu.memory_space<vmem>>, vector<1x6x256xf32>
    %3 = vector.shape_cast %2 : vector<1x6x256xf32> to vector<6x256xf32>
    %c0_5 = arith.constant 0 : index
    %c0_6 = arith.constant 0 : index
    %4 = vector.load %arg4[%c0_5, %c0_6] : memref<8x4xf32, #tpu.memory_space<vmem>>, vector<8x4xf32>
    %cst = arith.constant dense<0.000000e+00> : vector<8x256xf32>
    %5 = tpu.matmul %4, %1, %cst {dimension_numbers = #tpu.dot_dimension_numbers<[1], [0], [0], [1], [0, 0, 1, 1], [], []>} : vector<8x4xf32>, vector<4x256xf32>, vector<8x256xf32> -> vector<8x256xf32>
    %c0_7 = arith.constant 0 : index
    %c0_8 = arith.constant 0 : index
    %6 = vector.load %arg5[%c0_7, %c0_8] : memref<8x6xf32, #tpu.memory_space<vmem>>, vector<8x6xf32>
    %cst_9 = arith.constant dense<0.000000e+00> : vector<8x256xf32>
    %7 = tpu.matmul %6, %3, %cst_9 {dimension_numbers = #tpu.dot_dimension_numbers<[1], [0], [0], [1], [0, 0, 1, 1], [], []>} : vector<8x6xf32>, vector<6x256xf32>, vector<8x256xf32> -> vector<8x256xf32>
    %8 = arith.addf %5, %7 : vector<8x256xf32>
    %c0_10 = arith.constant 0 : index
    %c0_11 = arith.constant 0 : index
    %9 = vector.load %arg6[%c0_10, %c0_11] : memref<8x1xf32, #tpu.memory_space<vmem>>, vector<8x1xf32>
    %10 = vector.broadcast %9 : vector<8x1xf32> to vector<8x256xf32>
    %11 = arith.addf %8, %10 : vector<8x256xf32>
    %cst_12 = arith.constant 0.000000e+00 : f32
    %12 = vector.broadcast %cst_12 : f32 to vector<8x256xf32>
    %13 = arith.maximumf %11, %12 : vector<8x256xf32>
    %c0_13 = arith.constant 0 : index
    %c0_14 = arith.constant 0 : index
    %14 = vector.load %arg7[%c0_13, %c0_14] : memref<1x8xf32, #tpu.memory_space<vmem>>, vector<1x8xf32>
    %cst_15 = arith.constant dense<0.000000e+00> : vector<1x256xf32>
    %15 = tpu.matmul %14, %13, %cst_15 {dimension_numbers = #tpu.dot_dimension_numbers<[1], [0], [0], [1], [0, 0, 1, 1], [], []>} : vector<1x8xf32>, vector<8x256xf32>, vector<1x256xf32> -> vector<1x256xf32>
    %c0_16 = arith.constant 0 : index
    %c0_17 = arith.constant 0 : index
    %16 = vector.load %arg8[%c0_16, %c0_17] : memref<1x1xf32, #tpu.memory_space<vmem>>, vector<1x1xf32>
    %17 = vector.broadcast %16 : vector<1x1xf32> to vector<1x256xf32>
    %18 = arith.addf %15, %17 : vector<1x256xf32>
    %19 = arith.negf %18 : vector<1x256xf32>
    %20 = math.exp %19 : vector<1x256xf32>
    %cst_18 = arith.constant 1.000000e+00 : f32
    %21 = vector.broadcast %cst_18 : f32 to vector<1x256xf32>
    %22 = arith.addf %21, %20 : vector<1x256xf32>
    %23 = arith.divf %21, %22 : vector<1x256xf32>
    %24 = vector.broadcast %23 : vector<1x256xf32> to vector<4x256xf32>
    %25 = arith.mulf %1, %24 : vector<4x256xf32>
    %c0_19 = arith.constant 0 : index
    %c0_20 = arith.constant 0 : index
    %c0_21 = arith.constant 0 : index
    %26 = vector.load %arg9[%c0_19, %c0_20, %c0_21] : memref<1x4x256xf32, #tpu.memory_space<vmem>>, vector<1x4x256xf32>
    %27 = vector.shape_cast %26 : vector<1x4x256xf32> to vector<4x256xf32>
    %28 = vector.shape_cast %25 : vector<4x256xf32> to vector<1x4x256xf32>
    tpu.vector_store %arg9[%c0_19, %c0_20, %c0_21], %28 {strides = array<i32>} : memref<1x4x256xf32, #tpu.memory_space<vmem>>, vector<1x4x256xf32>,
    return
  }
  func.func @transform_0(%arg0: i32, %arg1: i32) -> (i32, i32, i32) {
    %c0_i32 = arith.constant 0 : i32
    %c0_i32_0 = arith.constant 0 : i32
    return %arg0, %c0_i32, %arg1 : i32, i32, i32
  }
  func.func @transform_1(%arg0: i32, %arg1: i32) -> (i32, i32, i32) {
    %c0_i32 = arith.constant 0 : i32
    %c0_i32_0 = arith.constant 0 : i32
    return %arg0, %c0_i32, %arg1 : i32, i32, i32
  }
  func.func @transform_2(%arg0: i32, %arg1: i32) -> (i32, i32) {
    %c0_i32 = arith.constant 0 : i32
    %c0_i32_0 = arith.constant 0 : i32
    %c0_i32_1 = arith.constant 0 : i32
    return %c0_i32, %c0_i32_0 : i32, i32
  }
  func.func @transform_3(%arg0: i32, %arg1: i32) -> (i32, i32) {
    %c0_i32 = arith.constant 0 : i32
    %c0_i32_0 = arith.constant 0 : i32
    %c0_i32_1 = arith.constant 0 : i32
    return %c0_i32, %c0_i32_0 : i32, i32
  }
  func.func @transform_4(%arg0: i32, %arg1: i32) -> (i32, i32) {
    %c0_i32 = arith.constant 0 : i32
    %c0_i32_0 = arith.constant 0 : i32
    %c0_i32_1 = arith.constant 0 : i32
    return %c0_i32, %c0_i32_0 : i32, i32
  }
  func.func @transform_5(%arg0: i32, %arg1: i32) -> (i32, i32) {
    %c0_i32 = arith.constant 0 : i32
    %c0_i32_0 = arith.constant 0 : i32
    %c0_i32_1 = arith.constant 0 : i32
    return %c0_i32, %c0_i32_0 : i32, i32
  }
  func.func @transform_6(%arg0: i32, %arg1: i32) -> (i32, i32) {
    %c0_i32 = arith.constant 0 : i32
    %c0_i32_0 = arith.constant 0 : i32
    %c0_i32_1 = arith.constant 0 : i32
    return %c0_i32, %c0_i32_0 : i32, i32
  }
  func.func @transform_7(%arg0: i32, %arg1: i32) -> (i32, i32, i32) {
    %c0_i32 = arith.constant 0 : i32
    %c0_i32_0 = arith.constant 0 : i32
    return %arg0, %c0_i32, %arg1 : i32, i32, i32
  }
}

</mosaic_0001>

<llo_original>
// kernel: tpu_custom_call.1
$region0: #{tpu_custom_call.1}
  #allocation0 [shape = 'u32[]', space=smem, size = 0x4, offset = 0x4, fixed_abs, tag = 'smem constant byte address 0x4 - core index']
  #allocation1 [shape = 'u32[72,128]{1,0:T(1,128)}', space=vmem, size = 0x9000, scoped, tag = 'internal scratch']
  #allocation2 [shape = 'f32[1,1]{1,0:T(1,128)S(1)}', space=vmem, size = 0x200, scoped, tag = 'scoped memory for tpu_custom_call.1']
  %s0 = inlined_call_operand.vmem [shape: f32[2,4,256], index: 0, kind: input, shape index: {}]
  %s1 = inlined_call_operand.vmem [shape: f32[2,6,256], index: 1, kind: input, shape index: {}]
  %s2 = inlined_call_operand.vmem [shape: f32[8,4], index: 2, kind: input, shape index: {}]
  %s3 = inlined_call_operand.vmem [shape: f32[8,6], index: 3, kind: input, shape index: {}]
  %s4 = inlined_call_operand.vmem [shape: f32[8,1], index: 4, kind: input, shape index: {}]
  %s5 = inlined_call_operand.vmem [shape: f32[1,8], index: 5, kind: input, shape index: {}]
  %s6 = inlined_call_operand.<no memory space> [shape: f32[1,1], index: 6, kind: input, shape index: {}]
  %s7 = inlined_call_operand.hbm [shape: f32[2,4,256], index: 7, kind: output, shape index: {}]
  %s8 = sld [smem:[#allocation0]]
  $region61: #{tpu_custom_call.1} parent=0
    _
  %s10 = ssub.s32 1, %s8
  %s11 = scalar_select 0, %s10, %s8
  %v12 = vstv %s6
  %13 = vst [vmem:[#allocation2] sm:$0x1] %v12
  $region1: #{tpu_custom_call.1} parent=0
    #allocation3 [shape = 'u8[8192]{0}', space=vmem, size = 0x2000, scoped, tag = 'output window, operand 0']
    #allocation4 [shape = 's32[2]{0}', space=sflag, size = 0x8, scoped, tag = 'scoped memory for tpu_custom_call.1']
    %14 = vsyncpa [#allocation4], 0
    %s15 = scalar_lea.sflag [#allocation4], 1
    %16 = vsyncpa %s15, 0
    loop: start=0, step=1, limit=4
    $region2: #{tpu_custom_call.1} parent=1 // loop_pre_header
      _
    $region3: #{tpu_custom_call.1} parent=1 // loop_header
      %s18 = sphi 0, %s22
      %p19 = scmp.ge.s32.totalorder %s18, 4
      %s25 = sphi 0, %s37
      %s26 = sphi 0, %s33
      %s27 = sphi 0, %s25
      %s28 = sphi 0, %s26
      %s29 = sphi 0, %s27
      %s30 = sphi 0, %s28
      %s42 = sphi 0, %s44
      %s45 = sphi 0, %s42
      %s46 = sphi 0, %s45
      %s62 = sphi 0, %s46
      %s70 = sphi 0, %s72
      %s73 = sphi 0, %s70
      %s74 = sphi 0, %s73
      %s90 = sphi 0, %s74
      %s94 = sphi 0, %s94
      %s96 = sphi 0, %s94
      %s97 = sphi 0, %s96
      %s111 = sphi 0, %s97
      %s115 = sphi 0, %s115
      %s117 = sphi 0, %s115
      %s118 = sphi 0, %s117
      %s132 = sphi 0, %s118
      %s136 = sphi 0, %s136
      %s138 = sphi 0, %s136
      %s139 = sphi 0, %s138
      %s153 = sphi 0, %s139
      %s157 = sphi 0, %s157
      %s159 = sphi 0, %s157
      %s160 = sphi 0, %s159
      %s174 = sphi 0, %s160
      %s178 = sphi 0, %s178
      %s180 = sphi 0, %s178
      %s181 = sphi 0, %s180
      %s195 = sphi 0, %s181
      %s203 = sphi 0, %s205
      %s206 = sphi 0, %s203
      %s207 = sphi 0, %s206
      %s223 = sphi 0, %s207
    $region4: #{tpu_custom_call.1} parent=1 // loop_header_branch
      %21 = sbr.rel (%p19) target = $region8
    $region5: #{tpu_custom_call.1} parent=1 // loop_body
      %s23 = ssub.s32 %s18, 1
      %s24 = ssub.s32 %s18, 2
      %s31 = sadd.s32 1, %s26
      %p32 = scmp.ge.s32.totalorder %s31, 1
      %s33 = scalar_select %p32, 0, %s31
      %s34 = sadd.s32 1, %s25
      %s35 = scalar_select %p32, %s34, %s25
      %p36 = scmp.ge.s32.totalorder %s35, 2
      %s37 = scalar_select %p36, 0, %s35
      %s38 = ssub.s32 %s25, %s37
      %s39 = ssub.s32 %s26, %s33
      %s40 = sor.u32 %s38, %s39
      %p41 = scmp.eq.s32.totalorder %s40, 0
      %s43 = sadd.s32 %s42, 1
      %s44 = scalar_select %p41, %s42, %s43
      %p47 = pneg %p41
      %p48 = scmp.eq.s32.totalorder %s18, 1
      %p49 = por %p47, %p48
      %p50 = scmp.ne.s32.totalorder %s42, %s45
      %p51 = scmp.eq.s32.totalorder %s18, 0
      %p52 = por %p50, %p51
      %p53 = scmp.ne.s32.totalorder %s42, %s45
      %p54 = scmp.eq.s32.totalorder %s23, 1
      %p55 = por %p53, %p54
      %p56 = scmp.ne.s32.totalorder %s45, %s46
      %p57 = scmp.eq.s32.totalorder %s23, 0
      %p58 = por %p56, %p57
      %p59 = scmp.ne.s32.totalorder %s45, %s46
      %p60 = scmp.eq.s32.totalorder %s24, 1
      %p61 = por %p59, %p60
      %p63 = scmp.ne.s32.totalorder %s46, %s62
      %p64 = scmp.eq.s32.totalorder %s24, 0
      %p65 = por %p63, %p64
      %s66 = ssub.s32 %s25, %s37
      %s67 = ssub.s32 %s26, %s33
      %s68 = sor.u32 %s66, %s67
      %p69 = scmp.eq.s32.totalorder %s68, 0
      %s71 = sadd.s32 %s70, 1
      %s72 = scalar_select %p69, %s70, %s71
      %p75 = pneg %p69
      %p76 = scmp.eq.s32.totalorder %s18, 1
      %p77 = por %p75, %p76
      %p78 = scmp.ne.s32.totalorder %s70, %s73
      %p79 = scmp.eq.s32.totalorder %s18, 0
      %p80 = por %p78, %p79
      %p81 = scmp.ne.s32.totalorder %s70, %s73
      %p82 = scmp.eq.s32.totalorder %s23, 1
      %p83 = por %p81, %p82
      %p84 = scmp.ne.s32.totalorder %s73, %s74
      %p85 = scmp.eq.s32.totalorder %s23, 0
      %p86 = por %p84, %p85
      %p87 = scmp.ne.s32.totalorder %s73, %s74
      %p88 = scmp.eq.s32.totalorder %s24, 1
      %p89 = por %p87, %p88
      %p91 = scmp.ne.s32.totalorder %s74, %s90
      %p92 = scmp.eq.s32.totalorder %s24, 0
      %p93 = por %p91, %p92
      %s95 = sadd.s32 %s94, 1
      %p98 = scmp.eq.s32.totalorder %s18, 1
      %p99 = scmp.ne.s32.totalorder %s94, %s96
      %p100 = scmp.eq.s32.totalorder %s18, 0
      %p101 = por %p99, %p100
      %p102 = scmp.ne.s32.totalorder %s94, %s96
      %p103 = scmp.eq.s32.totalorder %s23, 1
      %p104 = por %p102, %p103
      %p105 = scmp.ne.s32.totalorder %s96, %s97
      %p106 = scmp.eq.s32.totalorder %s23, 0
      %p107 = por %p105, %p106
      %p108 = scmp.ne.s32.totalorder %s96, %s97
      %p109 = scmp.eq.s32.totalorder %s24, 1
      %p110 = por %p108, %p109
      %p112 = scmp.ne.s32.totalorder %s97, %s111
      %p113 = scmp.eq.s32.totalorder %s24, 0
      %p114 = por %p112, %p113
      %s116 = sadd.s32 %s115, 1
      %p119 = scmp.eq.s32.totalorder %s18, 1
      %p120 = scmp.ne.s32.totalorder %s115, %s117
      %p121 = scmp.eq.s32.totalorder %s18, 0
      %p122 = por %p120, %p121
      %p123 = scmp.ne.s32.totalorder %s115, %s117
      %p124 = scmp.eq.s32.totalorder %s23, 1
      %p125 = por %p123, %p124
      %p126 = scmp.ne.s32.totalorder %s117, %s118
      %p127 = scmp.eq.s32.totalorder %s23, 0
      %p128 = por %p126, %p127
      %p129 = scmp.ne.s32.totalorder %s117, %s118
      %p130 = scmp.eq.s32.totalorder %s24, 1
      %p131 = por %p129, %p130
      %p133 = scmp.ne.s32.totalorder %s118, %s132
      %p134 = scmp.eq.s32.totalorder %s24, 0
      %p135 = por %p133, %p134
      %s137 = sadd.s32 %s136, 1
      %p140 = scmp.eq.s32.totalorder %s18, 1
      %p141 = scmp.ne.s32.totalorder %s136, %s138
      %p142 = scmp.eq.s32.totalorder %s18, 0
      %p143 = por %p141, %p142
      %p144 = scmp.ne.s32.totalorder %s136, %s138
      %p145 = scmp.eq.s32.totalorder %s23, 1
      %p146 = por %p144, %p145
      %p147 = scmp.ne.s32.totalorder %s138, %s139
      %p148 = scmp.eq.s32.totalorder %s23, 0
      %p149 = por %p147, %p148
      %p150 = scmp.ne.s32.totalorder %s138, %s139
      %p151 = scmp.eq.s32.totalorder %s24, 1
      %p152 = por %p150, %p151
      %p154 = scmp.ne.s32.totalorder %s139, %s153
      %p155 = scmp.eq.s32.totalorder %s24, 0
      %p156 = por %p154, %p155
      %s158 = sadd.s32 %s157, 1
      %p161 = scmp.eq.s32.totalorder %s18, 1
      %p162 = scmp.ne.s32.totalorder %s157, %s159
      %p163 = scmp.eq.s32.totalorder %s18, 0
      %p164 = por %p162, %p163
      %p165 = scmp.ne.s32.totalorder %s157, %s159
      %p166 = scmp.eq.s32.totalorder %s23, 1
      %p167 = por %p165, %p166
      %p168 = scmp.ne.s32.totalorder %s159, %s160
      %p169 = scmp.eq.s32.totalorder %s23, 0
      %p170 = por %p168, %p169
      %p171 = scmp.ne.s32.totalorder %s159, %s160
      %p172 = scmp.eq.s32.totalorder %s24, 1
      %p173 = por %p171, %p172
      %p175 = scmp.ne.s32.totalorder %s160, %s174
      %p176 = scmp.eq.s32.totalorder %s24, 0
      %p177 = por %p175, %p176
      %s179 = sadd.s32 %s178, 1
      %p182 = scmp.eq.s32.totalorder %s18, 1
      %p183 = scmp.ne.s32.totalorder %s178, %s180
      %p184 = scmp.eq.s32.totalorder %s18, 0
      %p185 = por %p183, %p184
      %p186 = scmp.ne.s32.totalorder %s178, %s180
      %p187 = scmp.eq.s32.totalorder %s23, 1
      %p188 = por %p186, %p187
      %p189 = scmp.ne.s32.totalorder %s180, %s181
      %p190 = scmp.eq.s32.totalorder %s23, 0
      %p191 = por %p189, %p190
      %p192 = scmp.ne.s32.totalorder %s180, %s181
      %p193 = scmp.eq.s32.totalorder %s24, 1
      %p194 = por %p192, %p193
      %p196 = scmp.ne.s32.totalorder %s181, %s195
      %p197 = scmp.eq.s32.totalorder %s24, 0
      %p198 = por %p196, %p197
      %s199 = ssub.s32 %s25, %s37
      %s200 = ssub.s32 %s26, %s33
      %s201 = sor.u32 %s199, %s200
      %p202 = scmp.eq.s32.totalorder %s201, 0
      %s204 = sadd.s32 %s203, 1
      %s205 = scalar_select %p202, %s203, %s204
      %p208 = pneg %p202
      %p209 = scmp.eq.s32.totalorder %s18, 1
      %p210 = por %p208, %p209
      %p211 = scmp.ne.s32.totalorder %s203, %s206
      %p212 = scmp.eq.s32.totalorder %s18, 0
      %p213 = por %p211, %p212
      %p214 = scmp.ne.s32.totalorder %s203, %s206
      %p215 = scmp.eq.s32.totalorder %s23, 1
      %p216 = por %p214, %p215
      %p217 = scmp.ne.s32.totalorder %s206, %s207
      %p218 = scmp.eq.s32.totalorder %s23, 0
      %p219 = por %p217, %p218
      %p220 = scmp.ne.s32.totalorder %s206, %s207
      %p221 = scmp.eq.s32.totalorder %s24, 1
      %p222 = por %p220, %p221
      %p224 = scmp.ne.s32.totalorder %s207, %s223
      %p225 = scmp.eq.s32.totalorder %s24, 0
      %p226 = por %p224, %p225
      %p227 = scmp.le.s32.totalorder 1, %s18
      %p228 = scmp.lt.s32.totalorder %s18, 3
      %p229 = pnand %p227, %p228
      %p230 = pneg %p229
      // Predicated region
      $region9: #{tpu_custom_call.1} parent=5 // pred_check
        _
      $region10: #{tpu_custom_call.1} parent=5 // pred_check_branch
        %232 = sbr.rel (%p229) target = $region12
      $region11: #{tpu_custom_call.1} parent=5 // pred_region
        %s233 = ssub.s32 %s18, 1
        // Predicated region
        $region13: #{tpu_custom_call.1} parent=11 // pred_check
          %p234 = pneg %p107
        $region14: #{tpu_custom_call.1} parent=11 // pred_check_branch
          %236 = sbr.rel (%p234) target = $region16
        $region15: #{tpu_custom_call.1} parent=11 // pred_region
          _
        $region16: #{tpu_custom_call.1} parent=11 // pred_fallthru
          _
        // Predicated region
        $region17: #{tpu_custom_call.1} parent=11 // pred_check
          %p237 = pneg %p128
        $region18: #{tpu_custom_call.1} parent=11 // pred_check_branch
          %239 = sbr.rel (%p237) target = $region20
        $region19: #{tpu_custom_call.1} parent=11 // pred_region
          _
        $region20: #{tpu_custom_call.1} parent=11 // pred_fallthru
          _
        // Predicated region
        $region21: #{tpu_custom_call.1} parent=11 // pred_check
          %p240 = pneg %p149
        $region22: #{tpu_custom_call.1} parent=11 // pred_check_branch
          %242 = sbr.rel (%p240) target = $region24
        $region23: #{tpu_custom_call.1} parent=11 // pred_region
          _
        $region24: #{tpu_custom_call.1} parent=11 // pred_fallthru
          _
        // Predicated region
        $region25: #{tpu_custom_call.1} parent=11 // pred_check
          %p243 = pneg %p170
        $region26: #{tpu_custom_call.1} parent=11 // pred_check_branch
          %245 = sbr.rel (%p243) target = $region28
        $region27: #{tpu_custom_call.1} parent=11 // pred_region
          _
        $region28: #{tpu_custom_call.1} parent=11 // pred_fallthru
          _
        // Predicated region
        $region29: #{tpu_custom_call.1} parent=11 // pred_check
          %p246 = pneg %p191
        $region30: #{tpu_custom_call.1} parent=11 // pred_check_branch
          %248 = sbr.rel (%p246) target = $region32
        $region31: #{tpu_custom_call.1} parent=11 // pred_region
          _
        $region32: #{tpu_custom_call.1} parent=11 // pred_fallthru
          _
      $region12: #{tpu_custom_call.1} parent=5 // pred_fallthru
        _
      %p249 = scmp.lt.s32.totalorder %s18, 2
      // Predicated region
      $region33: #{tpu_custom_call.1} parent=5 // pred_check
        %p250 = pneg %p249
      $region34: #{tpu_custom_call.1} parent=5 // pred_check_branch
        %252 = sbr.rel (%p250) target = $region36
      $region35: #{tpu_custom_call.1} parent=5 // pred_region
        // Predicated region
        $region37: #{tpu_custom_call.1} parent=35 // pred_check
          %p253 = pneg %p52
        $region38: #{tpu_custom_call.1} parent=35 // pred_check_branch
          %255 = sbr.rel (%p253) target = $region40
        $region39: #{tpu_custom_call.1} parent=35 // pred_region
          %s256 = smul.u32 2, %s26
          %p257 = scmp.lt.s32.totalorder %s25, 1
          %s258 = scalar_select %p257, %s25, 1
          %p259 = scmp.lt.s32.totalorder %s256, 1
          %s260 = scalar_select %p259, %s256, 1
          %s261 = smul.addr %s258, 2
          %s262 = sadd.s32 %s260, %s261
          %s263 = smul.addr %s262, 4
          %s264 = scalar_lea.vmem %s0, %s263
          %s265 = smul.u32 2, %s26
        $region40: #{tpu_custom_call.1} parent=35 // pred_fallthru
          _
        // Predicated region
        $region41: #{tpu_custom_call.1} parent=35 // pred_check
          %p266 = pneg %p80
        $region42: #{tpu_custom_call.1} parent=35 // pred_check_branch
          %268 = sbr.rel (%p266) target = $region44
        $region43: #{tpu_custom_call.1} parent=35 // pred_region
          %s269 = smul.u32 2, %s26
          %p270 = scmp.lt.s32.totalorder %s25, 1
          %s271 = scalar_select %p270, %s25, 1
          %p272 = scmp.lt.s32.totalorder %s269, 1
          %s273 = scalar_select %p272, %s269, 1
          %s274 = smul.addr %s271, 2
          %s275 = sadd.s32 %s273, %s274
          %s276 = smul.addr %s275, 8
          %s277 = scalar_lea.vmem %s1, %s276
          %s278 = smul.u32 2, %s26
        $region44: #{tpu_custom_call.1} parent=35 // pred_fallthru
          _
      $region36: #{tpu_custom_call.1} parent=5 // pred_fallthru
        _
      %p279 = scmp.le.s32.totalorder 1, %s18
      %p280 = scmp.lt.s32.totalorder %s18, 3
      %p281 = pnand %p279, %p280
      %p282 = pneg %p281
      // Predicated region
      $region45: #{tpu_custom_call.1} parent=5 // pred_check
        _
      $region46: #{tpu_custom_call.1} parent=5 // pred_check_branch
        %284 = sbr.rel (%p281) target = $region48
      $region47: #{tpu_custom_call.1} parent=5 // pred_region
        %s285 = ssub.s32 %s18, 1
        %s286 = smul.u32 2, %s28
        %p287 = scmp.lt.s32.totalorder %s27, 1
        %s288 = scalar_select %p287, %s27, 1
        %p289 = scmp.lt.s32.totalorder %s286, 1
        %s290 = scalar_select %p289, %s286, 1
        %s291 = smul.addr %s288, 2
        %s292 = sadd.s32 %s290, %s291
        %s293 = smul.addr %s292, 4
        %s294 = scalar_lea.vmem %s0, %s293
        %p295 = pneg %p58
        %p296 = pneg %p55
        %s297 = smul.u32 2, %s28
        %p298 = scmp.lt.s32.totalorder %s27, 1
        %s299 = scalar_select %p298, %s27, 1
        %p300 = scmp.lt.s32.totalorder %s297, 1
        %s301 = scalar_select %p300, %s297, 1
        %s302 = smul.addr %s299, 2
        %s303 = sadd.s32 %s301, %s302
        %s304 = smul.addr %s303, 8
        %s305 = scalar_lea.vmem %s1, %s304
        %p306 = pneg %p86
        %p307 = pneg %p83
        %p308 = pneg %p107
        %p309 = pneg %p104
        %p310 = pneg %p128
        %p311 = pneg %p125
        %p312 = pneg %p149
        %p313 = pneg %p146
        %p314 = pneg %p170
        %p315 = pneg %p167
        %p316 = pneg %p191
        %p317 = pneg %p188
        %p318 = pneg %p219
        %p319 = pneg %p216
        %s320 = sand.u32 %s206, 1
        %s321 = scalar_lea.sflag [#allocation4], %s320
        %s322 = sand.u32 %s206, 1
        %s323 = smul.addr %s322, 8
        %s324 = scalar_lea.vmem [#allocation3], %s323
        %s325 = smul.u32 2, %s28
        %p326 = scmp.lt.s32.totalorder %s27, 1
        %s327 = scalar_select %p326, %s27, 1
        %p328 = scmp.lt.s32.totalorder %s325, 1
        %s329 = scalar_select %p328, %s325, 1
        %s330 = smul.addr %s327, 2
        %s331 = sadd.s32 %s329, %s330
        %s332 = smul.addr %s331, 4
        %s333 = scalar_lea.vmem %s0, %s332
        %s334 = smul.u32 2, %s28
        %s335 = smul.u32 2, %s28
        %p336 = scmp.lt.s32.totalorder %s27, 1
        %s337 = scalar_select %p336, %s27, 1
        %p338 = scmp.lt.s32.totalorder %s335, 1
        %s339 = scalar_select %p338, %s335, 1
        %s340 = smul.addr %s337, 2
        %s341 = sadd.s32 %s339, %s340
        %s342 = smul.addr %s341, 8
        %s343 = scalar_lea.vmem %s1, %s342
        %s344 = smul.u32 2, %s28
        %s345 = smul.u32 2, %s28
        %v346 = vld [vmem:[%s333] sm:$0xff]
        %v347 = vld [vmem:[%s343] sm:$0x3f]
        %v348 = vld [vmem:[%s343 + $0x8] sm:$0x3f]
        %v349 = vld [vmem:[%s2] sm:$0xff]
        %v350 = vld [vmem:[%s3] sm:$0xff]
        %vm351 = vcmask 48128
        %v353 = vsel %vm351, %v350, 0
        %vm355 = vcmask 1045504
        %v357 = vsel %vm355, %v347, 0
        %v360 = vsel %vm355, %v348, 0
        %362 = vmatpush.msra.mxu0 0.0
        %363 = vmatpush.msra.mxu0 0.0
        %364 = vmatpush.msra.mxu0 0.0
        %365 = vmatpush.msra.mxu0 0.0
        %366 = vmatpush.msra.mxu0 0.0
        %367 = vmatpush.msra.mxu0 0.0
        %368 = vmatpush.msra.mxu0 0.0
        %369 = vmatpush.msra.mxu0 0.0
        %370 = vmatpush.msra.mxu0 0.0
        %371 = vmatpush.msra.mxu0 0.0
        %372 = vmatpush.msra.mxu0 0.0
        %373 = vmatpush.msra.mxu0 0.0
        %374 = vmatpush.msra.mxu0 0.0
        %375 = vmatpush.msra.mxu0 0.0
        %376 = vmatpush.msra.mxu0 0.0
        %377 = vmatpush.msra.mxu0 %v357
        %378 = vmatmul.f32.gmra.mxu0 %v353
        %v379 = vpop.f32.mrf.mxu0
        %v380 = vadd.f32 0.0, %v379
        %381 = vdwg.mxu0
        %382 = vmatpush.msra.mxu0 0.0
        %383 = vmatpush.msra.mxu0 0.0
        %384 = vmatpush.msra.mxu0 0.0
        %385 = vmatpush.msra.mxu0 0.0
        %386 = vmatpush.msra.mxu0 0.0
        %387 = vmatpush.msra.mxu0 0.0
        %388 = vmatpush.msra.mxu0 0.0
        %389 = vmatpush.msra.mxu0 0.0
        %390 = vmatpush.msra.mxu0 0.0
        %391 = vmatpush.msra.mxu0 0.0
        %392 = vmatpush.msra.mxu0 0.0
        %393 = vmatpush.msra.mxu0 0.0
        %394 = vmatpush.msra.mxu0 0.0
        %395 = vmatpush.msra.mxu0 0.0
        %396 = vmatpush.msra.mxu0 0.0
        %397 = vmatpush.msra.mxu0 %v360
        %398 = vmatmul.f32.gmra.mxu0 %v353
        %v399 = vpop.f32.mrf.mxu0
        %v400 = vadd.f32 0.0, %v399
        %401 = vdwg.mxu0
        %403 = vst [vmem:[#allocation1] ss:$2 sm:$0xff] %v346
        %v404 = vld.sshfl [vmem:[#allocation1] sm:$0xff pattern:$0x75316420]
        %v405 = vld.sshfl [vmem:[#allocation1 + $0x8] sm:$0xff pattern:$0x75316420]
        %vm406 = vcmask 31744
        %v408 = vsel %vm406, %v349, 0
        %vm410 = vcmask 1043456
        %v411 = vsel %vm410, %v404, 0
        %v413 = vsel %vm410, %v405, 0
        %415 = vmatpush.msra.mxu0 0.0
        %416 = vmatpush.msra.mxu0 0.0
        %417 = vmatpush.msra.mxu0 0.0
        %418 = vmatpush.msra.mxu0 0.0
        %419 = vmatpush.msra.mxu0 0.0
        %420 = vmatpush.msra.mxu0 0.0
        %421 = vmatpush.msra.mxu0 0.0
        %422 = vmatpush.msra.mxu0 0.0
        %423 = vmatpush.msra.mxu0 0.0
        %424 = vmatpush.msra.mxu0 0.0
        %425 = vmatpush.msra.mxu0 0.0
        %426 = vmatpush.msra.mxu0 0.0
        %427 = vmatpush.msra.mxu0 0.0
        %428 = vmatpush.msra.mxu0 0.0
        %429 = vmatpush.msra.mxu0 0.0
        %430 = vmatpush.msra.mxu0 %v411
        %431 = vmatmul.f32.gmra.mxu0 %v408
        %v432 = vpop.f32.mrf.mxu0
        %v433 = vadd.f32 %v380, %v432
        %434 = vdwg.mxu0
        %435 = vmatpush.msra.mxu0 0.0
        %436 = vmatpush.msra.mxu0 0.0
        %437 = vmatpush.msra.mxu0 0.0
        %438 = vmatpush.msra.mxu0 0.0
        %439 = vmatpush.msra.mxu0 0.0
        %440 = vmatpush.msra.mxu0 0.0
        %441 = vmatpush.msra.mxu0 0.0
        %442 = vmatpush.msra.mxu0 0.0
        %443 = vmatpush.msra.mxu0 0.0
        %444 = vmatpush.msra.mxu0 0.0
        %445 = vmatpush.msra.mxu0 0.0
        %446 = vmatpush.msra.mxu0 0.0
        %447 = vmatpush.msra.mxu0 0.0
        %448 = vmatpush.msra.mxu0 0.0
        %449 = vmatpush.msra.mxu0 0.0
        %450 = vmatpush.msra.mxu0 %v413
        %451 = vmatmul.f32.gmra.mxu0 %v408
        %v452 = vpop.f32.mrf.mxu0
        %v453 = vadd.f32 %v400, %v452
        %454 = vdwg.mxu0
        %v455 = vld [vmem:[%s4] sm:$0xff]
        %457 = vset.pattern.permute.xlu0 0
        %458 = vperm.xlu0 %457, %v455
        %v459 = vpop.permute.xlu0 %458
        %v461 = vadd.f32 %v433, %v459
        %v462 = vadd.f32 %v453, %v459
        %v463 = vmax.f32 %v461, 0.0
        %v464 = vmax.f32 %v462, 0.0
        %v465 = vld [vmem:[%s5] sm:$0x1]
        %v466 = vld [vmem:[#allocation2] sm:$0x1]
        %468 = vset.pattern.permute.xlu0 0
        %469 = vperm.xlu0 %468, %v466
        %v470 = vpop.permute.xlu0 %469
        %v472 = vperm.slane %v470, 0
        %vm473 = vcmask 64512
        %v475 = vsel %vm473, %v465, 0
        %477 = vmatpush.msra.mxu0 0.0
        %478 = vmatpush.msra.mxu0 0.0
        %479 = vmatpush.msra.mxu0 0.0
        %480 = vmatpush.msra.mxu0 0.0
        %481 = vmatpush.msra.mxu0 0.0
        %482 = vmatpush.msra.mxu0 0.0
        %483 = vmatpush.msra.mxu0 0.0
        %484 = vmatpush.msra.mxu0 0.0
        %485 = vmatpush.msra.mxu0 0.0
        %486 = vmatpush.msra.mxu0 0.0
        %487 = vmatpush.msra.mxu0 0.0
        %488 = vmatpush.msra.mxu0 0.0
        %489 = vmatpush.msra.mxu0 0.0
        %490 = vmatpush.msra.mxu0 0.0
        %491 = vmatpush.msra.mxu0 0.0
        %492 = vmatpush.msra.mxu0 %v463
        %493 = vmatmul.f32.gmra.mxu0 %v475
        %v494 = vpop.f32.mrf.mxu0
        %v495 = vadd.f32 %v472, %v494
        %496 = vdwg.mxu0
        %497 = vmatpush.msra.mxu0 0.0
        %498 = vmatpush.msra.mxu0 0.0
        %499 = vmatpush.msra.mxu0 0.0
        %500 = vmatpush.msra.mxu0 0.0
        %501 = vmatpush.msra.mxu0 0.0
        %502 = vmatpush.msra.mxu0 0.0
        %503 = vmatpush.msra.mxu0 0.0
        %504 = vmatpush.msra.mxu0 0.0
        %505 = vmatpush.msra.mxu0 0.0
        %506 = vmatpush.msra.mxu0 0.0
        %507 = vmatpush.msra.mxu0 0.0
        %508 = vmatpush.msra.mxu0 0.0
        %509 = vmatpush.msra.mxu0 0.0
        %510 = vmatpush.msra.mxu0 0.0
        %511 = vmatpush.msra.mxu0 0.0
        %512 = vmatpush.msra.mxu0 %v464
        %513 = vmatmul.f32.gmra.mxu0 %v475
        %v514 = vpop.f32.mrf.mxu0
        %v515 = vadd.f32 %v472, %v514
        %516 = vdwg.mxu0
        %v517 = vxor.u32 %v495, 2147483648
        %v518 = vxor.u32 %v515, 2147483648
        %v519 = vmul.f32 %v517, 1.442695
        %v520 = vpow.pop %v519
        %v521 = vmul.f32 %v518, 1.442695
        %v522 = vpow.pop %v521
        %v523 = vadd.f32 %v520, 1.0
        %v524 = vadd.f32 %v522, 1.0
        %v525 = vrcp.pop %v523
        %v526 = vmul.f32 %v523, %v525
        %v527 = vsub.f32 1.0, %v526
        %v528 = vmul.f32 %v525, %v527
        %v529 = vadd.f32 %v525, %v528
        %vm530 = vweird.f32 %v523
        %vm531 = vweird.f32 %v525
        %vm532 = vmor %vm530, %vm531
        %v533 = vsel %vm532, %v525, %v529
        %v534 = vand.u32 2147483647, %v523
        %vm535 = vcmp.eq.f32.partialorder %v534, 8.507059e+37
        %v536 = vand.u32 %v523, 2147483648
        %v537 = vor.u32 1.1754944e-38, %v536
        %v538 = vsel %vm535, %v537, %v533
        %v539 = vmul.f32 1.0, %v538
        %v540 = vrcp.pop %v524
        %v541 = vmul.f32 %v524, %v540
        %v542 = vsub.f32 1.0, %v541
        %v543 = vmul.f32 %v540, %v542
        %v544 = vadd.f32 %v540, %v543
        %vm545 = vweird.f32 %v524
        %vm546 = vweird.f32 %v540
        %vm547 = vmor %vm545, %vm546
        %v548 = vsel %vm547, %v540, %v544
        %v549 = vand.u32 2147483647, %v524
        %vm550 = vcmp.eq.f32.partialorder %v549, 8.507059e+37
        %v551 = vand.u32 %v524, 2147483648
        %v552 = vor.u32 1.1754944e-38, %v551
        %v553 = vsel %vm550, %v552, %v548
        %v554 = vmul.f32 1.0, %v553
        %v555 = vperm.slane %v539, 0
        %v556 = vperm.slane %v554, 0
        %v559 = vrot.slane %v556, 4
        %v560 = vsel %vm410, %v555, %v559
        %v562 = vmul.f32 %v346, %v560
        %563 = vst [vmem:[%s324] sm:$0xff] %v562
        %s564 = sand.u32 %s206, 1
        %s565 = scalar_lea.sflag [#allocation4], %s564
        %s566 = sand.u32 %s206, 1
        %s567 = smul.addr %s566, 8
        %s568 = scalar_lea.vmem [#allocation3], %s567
        // Predicated region
        $region49: #{tpu_custom_call.1} parent=47 // pred_check
          %p569 = pneg %p216
        $region50: #{tpu_custom_call.1} parent=47 // pred_check_branch
          %571 = sbr.rel (%p569) target = $region52
        $region51: #{tpu_custom_call.1} parent=47 // pred_region
          %s572 = smul.u32 2, %s28
          %574 = vsyncadd %s565, 0
          %s575 = smul.addr %s27, 2
          %s576 = sadd.s32 %s572, %s575
          %s577 = smul.addr %s576, 4
          %s578 = scalar_lea.hbm %s7, %s577
          %s580 = sshll.u32 %s568, 4
          %s581 = int_to_ptr.vmem [resolvable:$true] %s580
          %s582 = sshll.u32 %s578, 4
          %s583 = int_to_ptr.hbm [resolvable:$true] %s582
          %585 = dma.vmem_to_hbm [thread:$0]  %s581, 128, %s583, %s565
        $region52: #{tpu_custom_call.1} parent=47 // pred_fallthru
          _
      $region48: #{tpu_custom_call.1} parent=5 // pred_fallthru
        _
      %p586 = scmp.le.s32.totalorder 2, %s18
      // Predicated region
      $region53: #{tpu_custom_call.1} parent=5 // pred_check
        %p587 = pneg %p586
      $region54: #{tpu_custom_call.1} parent=5 // pred_check_branch
        %589 = sbr.rel (%p587) target = $region56
      $region55: #{tpu_custom_call.1} parent=5 // pred_region
        %s590 = ssub.s32 %s18, 2
        // Predicated region
        $region57: #{tpu_custom_call.1} parent=55 // pred_check
          %p591 = pneg %p222
        $region58: #{tpu_custom_call.1} parent=55 // pred_check_branch
          %593 = sbr.rel (%p591) target = $region60
        $region59: #{tpu_custom_call.1} parent=55 // pred_region
          %s594 = sand.u32 %s207, 1
          %s595 = scalar_lea.sflag [#allocation4], %s594
          %s596 = sand.u32 %s207, 1
          %s597 = smul.addr %s596, 8
          %s598 = scalar_lea.vmem [#allocation3], %s597
          %600 = dma.done %s595, 128
        $region60: #{tpu_custom_call.1} parent=55 // pred_fallthru
          _
      $region56: #{tpu_custom_call.1} parent=5 // pred_fallthru
        _
    $region6: #{tpu_custom_call.1} parent=1 // loop_footer
      %s22 = sadd.s32 1, %s18
    $region7: #{tpu_custom_call.1} parent=1 // loop_footer_branch
      %17 = sbr.rel target = $region3
    $region8: #{tpu_custom_call.1} parent=1 // loop_exit
      _
    %601 = vsyncpa [#allocation4], 1
    %s602 = scalar_lea.sflag [#allocation4], 1
    %603 = vsyncpa %s602, 1

</llo_original>
